<compile_context>
chip_gen: v5e
topology: v5e:2x2
jax: 0.10.0
libtpu: 0.0.40
codegen_flags: <defaults>
</compile_context>

<pallas_src>
import functools

import jax
import jax.numpy as jnp
from jax.experimental import pallas as pl
from jax.experimental.pallas import tpu as pltpu


def _round_up(x, m):
    return ((x + m - 1) // m) * m


def _mlp_kernel(n_layers, hidden_sizes, *refs):
    """refs = (x, [w_i, cw_i] * n_layers, bias_pack, wo, bo, out)."""
    x_ref = refs[0]
    w_refs = refs[1:1 + 2 * n_layers]
    bias_ref = refs[1 + 2 * n_layers]       # f32 [2*n_layers, Hmax]
    wo_ref = refs[2 + 2 * n_layers]         # bf16 [H_last, out_pad]
    bo_ref = refs[3 + 2 * n_layers]         # f32  [1, out_pad]
    out_ref = refs[4 + 2 * n_layers]        # f32  [TB, out_pad]

    h = x_ref[...]                          # f32 [TB, F_in]
    for i in range(n_layers):
        h_out = hidden_sizes[i]
        w_ref, cw_ref = w_refs[2 * i], w_refs[2 * i + 1]
        b = bias_ref[2 * i:2 * i + 1, :h_out]       # f32 [1, h_out]
        c = bias_ref[2 * i + 1:2 * i + 2, :h_out]   # f32 [1, h_out]

        # h1 = relu(h @ W + b)     (bf16 operands, f32 accumulation)
        h1 = jnp.maximum(
            jnp.dot(h.astype(jnp.bfloat16), w_ref[...],
                    preferred_element_type=jnp.float32) + b, 0.0)
        # h  = relu(h1 @ C + c) + h1   (residual branch)
        h = jnp.maximum(
            jnp.dot(h1.astype(jnp.bfloat16), cw_ref[...],
                    preferred_element_type=jnp.float32) + c, 0.0) + h1
        # BatchNorm (eval) folded into next layer's W/b in the wrapper.
        # Dropout (eval): identity.

    logits = (jnp.dot(h.astype(jnp.bfloat16), wo_ref[...],
                      preferred_element_type=jnp.float32) + bo_ref[...])
    out_ref[...] = jax.nn.sigmoid(logits)


def net_forward(x, params):
    """params: dict with 'layers' (list of per-layer dicts) and 'out' (w, b)."""
    x = x.astype(jnp.float32)
    batch, in_dim = x.shape
    n_layers = len(params["layers"])
    hidden_sizes = tuple(int(lp["w"].shape[1]) for lp in params["layers"])
    h_max = max(hidden_sizes)
    out_dim = int(params["out"]["w"].shape[1])
    out_pad = _round_up(out_dim, 128)       # lane-dense output stores
    eps = 1e-5

    # ---- fold BN(i) (eval) into the NEXT linear (i+1, or the output) --------
    # y = h*scale + shift ; y @ W + b = h @ (diag(scale) @ W) + (shift @ W + b)
    ws, bs, cws, cbs = [], [], [], []
    carry_scale, carry_shift = None, None
    for lp in params["layers"]:
        w = lp["w"].astype(jnp.float32)
        b = lp["b"].astype(jnp.float32)
        if carry_scale is not None:
            b = b + carry_shift @ w
            w = carry_scale[:, None] * w
        ws.append(w)
        bs.append(b)
        cws.append(lp["cw"].astype(jnp.float32))
        cbs.append(lp["cb"].astype(jnp.float32))
        scale = lp["bn_gamma"] / jnp.sqrt(lp["bn_var"] + eps)
        shift = lp["bn_beta"] - lp["bn_mean"] * scale
        carry_scale, carry_shift = scale, shift

    wo = params["out"]["w"].astype(jnp.float32)
    bo = params["out"]["b"].astype(jnp.float32)
    if carry_scale is not None:
        bo = bo + carry_shift @ wo
        wo = carry_scale[:, None] * wo

    # lane-dense padding of output linear
    wo_p = jnp.zeros((wo.shape[0], out_pad), jnp.float32).at[:, :out_dim].set(wo)
    bo_p = jnp.zeros((1, out_pad), jnp.float32).at[0, :out_dim].set(bo)

    # pack all per-layer bias vectors into one small f32 input
    bias_pack = jnp.zeros((2 * n_layers, h_max), jnp.float32)
    for i, (b, c) in enumerate(zip(bs, cbs)):
        bias_pack = bias_pack.at[2 * i, :b.shape[0]].set(b)
        bias_pack = bias_pack.at[2 * i + 1, :c.shape[0]].set(c)

    # bf16 matmul weights (MXU-friendly, halves VMEM/HBM weight bytes)
    w_bf = [w.astype(jnp.bfloat16) for w in ws]
    cw_bf = [cw.astype(jnp.bfloat16) for cw in cws]
    wo_bf = wo_p.astype(jnp.bfloat16)

    # ---- batch tiling --------------------------------------------------------
    tb = 256 if batch > 256 else _round_up(batch, 8)
    b_pad = _round_up(batch, tb)
    if b_pad != batch:
        x = jnp.zeros((b_pad, in_dim), jnp.float32).at[:batch].set(x)
    grid = (b_pad // tb,)

    flat_inputs = [x]
    in_specs = [pl.BlockSpec((tb, in_dim), lambda i: (i, 0))]
    for w, cw in zip(w_bf, cw_bf):
        flat_inputs += [w, cw]
        in_specs += [pl.BlockSpec(w.shape, lambda i: (0, 0)),
                     pl.BlockSpec(cw.shape, lambda i: (0, 0))]
    flat_inputs += [bias_pack, wo_bf, bo_p]
    in_specs += [pl.BlockSpec(bias_pack.shape, lambda i: (0, 0)),
                 pl.BlockSpec(wo_bf.shape, lambda i: (0, 0)),
                 pl.BlockSpec(bo_p.shape, lambda i: (0, 0))]

    # ---- cost / memory hints -------------------------------------------------
    flops = 0
    prev = in_dim
    for h in hidden_sizes:
        flops += 2 * b_pad * (prev * h + h * h)
        prev = h
    flops += 2 * b_pad * prev * out_pad
    transcendentals = b_pad * out_pad
    weight_bytes = sum(int(w.size) * 2 for w in w_bf + cw_bf) + int(wo_bf.size) * 2
    bytes_accessed = (int(x.size) * 4 + weight_bytes + int(bias_pack.size) * 4
                      + int(bo_p.size) * 4 + b_pad * out_pad * 4)
    act_bytes = 3 * 2 * tb * max(in_dim, h_max, out_pad) * 4   # rough, double-buffered
    vmem_limit = int(min(100 * 2**20, max(32 * 2**20, 2 * (weight_bytes + act_bytes))))

    kernel = functools.partial(_mlp_kernel, n_layers, hidden_sizes)

    out = pl.pallas_call(
        kernel,
        out_shape=jax.ShapeDtypeStruct((b_pad, out_pad), jnp.float32),
        grid=grid,
        in_specs=in_specs,
        out_specs=pl.BlockSpec((tb, out_pad), lambda i: (i, 0)),
        compiler_params=pltpu.CompilerParams(
            dimension_semantics=("parallel",),
            vmem_limit_bytes=vmem_limit),
        cost_estimate=pl.CostEstimate(
            flops=flops,
            transcendentals=transcendentals,
            bytes_accessed=bytes_accessed),
    )(*flat_inputs)

    return out[:batch, :out_dim]


def net_reference(x, params):
    """Pure-JAX eval-mode reference (mirrors the PyTorch forward)."""
    eps = 1e-5
    h = x.astype(jnp.float32)
    for lp in params["layers"]:
        h1 = jnp.maximum(h @ lp["w"] + lp["b"], 0.0)
        h = jnp.maximum(h1 @ lp["cw"] + lp["cb"], 0.0) + h1
        scale = lp["bn_gamma"] / jnp.sqrt(lp["bn_var"] + eps)
        shift = lp["bn_beta"] - lp["bn_mean"] * scale
        h = h * scale + shift
        # dropout (eval): identity
    logits = h @ params["out"]["w"] + params["out"]["b"]
    return jax.nn.sigmoid(logits)


def init_params(key, input_size, hidden_layers, output_size):
    """Deterministic synthetic parameter init (mirrors the module's shapes)."""
    params = {"layers": [], "out": {}}
    sizes = [input_size] + list(hidden_layers)
    for h_in, h_out in zip(sizes[:-1], sizes[1:]):
        key, k1, k2, k3, k4, k5, k6 = jax.random.split(key, 7)
        lp = {
            # nn.Linear(h_in, h_out): stored transposed as (in, out)
            "w": jax.random.normal(k1, (h_in, h_out), jnp.float32)
                 * (1.0 / jnp.sqrt(h_in)),
            "b": jax.random.normal(k2, (h_out,), jnp.float32) * 0.01,
            # constant layer nn.Linear(h_out, h_out)
            "cw": jax.random.normal(k3, (h_out, h_out), jnp.float32)
                  * (1.0 / jnp.sqrt(h_out)),
            "cb": jax.random.normal(k4, (h_out,), jnp.float32) * 0.01,
            # BatchNorm1d(h_out) params + running stats
            "bn_gamma": 1.0 + 0.1 * jax.random.normal(k5, (h_out,), jnp.float32),
            "bn_beta": 0.1 * jax.random.normal(k6, (h_out,), jnp.float32),
            "bn_mean": jnp.zeros((h_out,), jnp.float32),
            "bn_var": jnp.ones((h_out,), jnp.float32),
        }
        params["layers"].append(lp)
    key, ko1, ko2 = jax.random.split(key, 3)
    params["out"]["w"] = jax.random.normal(
        ko1, (hidden_layers[-1], output_size), jnp.float32
    ) * (1.0 / jnp.sqrt(hidden_layers[-1]))
    params["out"]["b"] = jax.random.normal(ko2, (output_size,), jnp.float32) * 0.01
    return params


if __name__ == "__main__":
    # Small shapes consistent with the module: tox21-like MLP.
    batch, input_size, hidden, output_size = 8, 32, [64, 64], 12

    key = jax.random.PRNGKey(0)
    key, kx = jax.random.split(key)
    x = jax.random.normal(kx, (batch, input_size), jnp.float32)

    params = init_params(key, input_size, hidden, output_size)

    out = net_forward(x, params)
    out = jax.block_until_ready(out)

    assert out.shape == (batch, output_size)
    assert bool(jnp.all((out >= 0.0) & (out <= 1.0)))
    ref = net_reference(x, params)
    max_err = float(jnp.max(jnp.abs(out - ref)))
    assert max_err < 5e-2, f"max abs error vs reference: {max_err}"
    print("KERNEL_OK")
</pallas_src>

<mosaic_0001>
module attributes {stable_mosaic.version = 11 : i64} {
  func.func @_mlp_kernel(%arg0: i32, %arg1: memref<8x32xf32, #tpu.memory_space<vmem>>, %arg2: memref<32x64xbf16, #tpu.memory_space<vmem>>, %arg3: memref<64x64xbf16, #tpu.memory_space<vmem>>, %arg4: memref<64x64xbf16, #tpu.memory_space<vmem>>, %arg5: memref<64x64xbf16, #tpu.memory_space<vmem>>, %arg6: memref<4x64xf32, #tpu.memory_space<vmem>>, %arg7: memref<64x128xbf16, #tpu.memory_space<vmem>>, %arg8: memref<1x128xf32, #tpu.memory_space<vmem>>, %arg9: memref<8x128xf32, #tpu.memory_space<vmem>>) attributes {dimension_semantics = [#tpu.dimension_semantics<parallel>], iteration_bounds = array<i64: 1>, scalar_prefetch = 0 : i64, scratch_operands = 0 : i64, tpu.core_type = #tpu.core_type<tc>, window_params = [{transform_indices = @transform_0, window_bounds = array<i64: 8, 32>}, {pipeline_mode = #tpu.pipeline_mode<synchronous>, transform_indices = @transform_1, window_bounds = array<i64: 32, 64>}, {pipeline_mode = #tpu.pipeline_mode<synchronous>, transform_indices = @transform_2, window_bounds = array<i64: 64, 64>}, {pipeline_mode = #tpu.pipeline_mode<synchronous>, transform_indices = @transform_3, window_bounds = array<i64: 64, 64>}, {pipeline_mode = #tpu.pipeline_mode<synchronous>, transform_indices = @transform_4, window_bounds = array<i64: 64, 64>}, {pipeline_mode = #tpu.pipeline_mode<synchronous>, transform_indices = @transform_5, window_bounds = array<i64: 4, 64>}, {pipeline_mode = #tpu.pipeline_mode<synchronous>, transform_indices = @transform_6, window_bounds = array<i64: 64, 128>}, {pipeline_mode = #tpu.pipeline_mode<synchronous>, transform_indices = @transform_7, window_bounds = array<i64: 1, 128>}, {transform_indices = @transform_8, window_bounds = array<i64: 8, 128>}]} {
    %c0 = arith.constant 0 : index
    %c0_0 = arith.constant 0 : index
    %0 = vector.load %arg1[%c0, %c0_0] : memref<8x32xf32, #tpu.memory_space<vmem>>, vector<8x32xf32>
    %c0_1 = arith.constant 0 : index
    %c0_2 = arith.constant 0 : index
    %1 = vector.load %arg6[%c0_1, %c0_2] : memref<4x64xf32, #tpu.memory_space<vmem>>, vector<1x64xf32>
    %c1 = arith.constant 1 : index
    %c0_3 = arith.constant 0 : index
    %2 = vector.load %arg6[%c1, %c0_3] : memref<4x64xf32, #tpu.memory_space<vmem>>, vector<1x64xf32>
    %3 = arith.truncf %0 : vector<8x32xf32> to vector<8x32xbf16>
    %c0_4 = arith.constant 0 : index
    %c0_5 = arith.constant 0 : index
    %4 = vector.load %arg2[%c0_4, %c0_5] : memref<32x64xbf16, #tpu.memory_space<vmem>>, vector<32x64xbf16>
    %cst = arith.constant dense<0.000000e+00> : vector<8x64xf32>
    %5 = tpu.matmul %3, %4, %cst {dimension_numbers = #tpu.dot_dimension_numbers<[1], [0], [0], [1], [0, 0, 1, 1], [], []>} : vector<8x32xbf16>, vector<32x64xbf16>, vector<8x64xf32> -> vector<8x64xf32>
    %6 = vector.broadcast %1 : vector<1x64xf32> to vector<8x64xf32>
    %7 = arith.addf %5, %6 : vector<8x64xf32>
    %cst_6 = arith.constant 0.000000e+00 : f32
    %8 = vector.broadcast %cst_6 : f32 to vector<8x64xf32>
    %9 = arith.maximumf %7, %8 : vector<8x64xf32>
    %10 = arith.truncf %9 : vector<8x64xf32> to vector<8x64xbf16>
    %c0_7 = arith.constant 0 : index
    %c0_8 = arith.constant 0 : index
    %11 = vector.load %arg3[%c0_7, %c0_8] : memref<64x64xbf16, #tpu.memory_space<vmem>>, vector<64x64xbf16>
    %cst_9 = arith.constant dense<0.000000e+00> : vector<8x64xf32>
    %12 = tpu.matmul %10, %11, %cst_9 {dimension_numbers = #tpu.dot_dimension_numbers<[1], [0], [0], [1], [0, 0, 1, 1], [], []>} : vector<8x64xbf16>, vector<64x64xbf16>, vector<8x64xf32> -> vector<8x64xf32>
    %13 = vector.broadcast %2 : vector<1x64xf32> to vector<8x64xf32>
    %14 = arith.addf %12, %13 : vector<8x64xf32>
    %cst_10 = arith.constant 0.000000e+00 : f32
    %15 = vector.broadcast %cst_10 : f32 to vector<8x64xf32>
    %16 = arith.maximumf %14, %15 : vector<8x64xf32>
    %17 = arith.addf %16, %9 : vector<8x64xf32>
    %c2 = arith.constant 2 : index
    %c0_11 = arith.constant 0 : index
    %18 = vector.load %arg6[%c2, %c0_11] : memref<4x64xf32, #tpu.memory_space<vmem>>, vector<1x64xf32>
    %c3 = arith.constant 3 : index
    %c0_12 = arith.constant 0 : index
    %19 = vector.load %arg6[%c3, %c0_12] : memref<4x64xf32, #tpu.memory_space<vmem>>, vector<1x64xf32>
    %20 = arith.truncf %17 : vector<8x64xf32> to vector<8x64xbf16>
    %c0_13 = arith.constant 0 : index
    %c0_14 = arith.constant 0 : index
    %21 = vector.load %arg4[%c0_13, %c0_14] : memref<64x64xbf16, #tpu.memory_space<vmem>>, vector<64x64xbf16>
    %cst_15 = arith.constant dense<0.000000e+00> : vector<8x64xf32>
    %22 = tpu.matmul %20, %21, %cst_15 {dimension_numbers = #tpu.dot_dimension_numbers<[1], [0], [0], [1], [0, 0, 1, 1], [], []>} : vector<8x64xbf16>, vector<64x64xbf16>, vector<8x64xf32> -> vector<8x64xf32>
    %23 = vector.broadcast %18 : vector<1x64xf32> to vector<8x64xf32>
    %24 = arith.addf %22, %23 : vector<8x64xf32>
    %cst_16 = arith.constant 0.000000e+00 : f32
    %25 = vector.broadcast %cst_16 : f32 to vector<8x64xf32>
    %26 = arith.maximumf %24, %25 : vector<8x64xf32>
    %27 = arith.truncf %26 : vector<8x64xf32> to vector<8x64xbf16>
    %c0_17 = arith.constant 0 : index
    %c0_18 = arith.constant 0 : index
    %28 = vector.load %arg5[%c0_17, %c0_18] : memref<64x64xbf16, #tpu.memory_space<vmem>>, vector<64x64xbf16>
    %cst_19 = arith.constant dense<0.000000e+00> : vector<8x64xf32>
    %29 = tpu.matmul %27, %28, %cst_19 {dimension_numbers = #tpu.dot_dimension_numbers<[1], [0], [0], [1], [0, 0, 1, 1], [], []>} : vector<8x64xbf16>, vector<64x64xbf16>, vector<8x64xf32> -> vector<8x64xf32>
    %30 = vector.broadcast %19 : vector<1x64xf32> to vector<8x64xf32>
    %31 = arith.addf %29, %30 : vector<8x64xf32>
    %cst_20 = arith.constant 0.000000e+00 : f32
    %32 = vector.broadcast %cst_20 : f32 to vector<8x64xf32>
    %33 = arith.maximumf %31, %32 : vector<8x64xf32>
    %34 = arith.addf %33, %26 : vector<8x64xf32>
    %35 = arith.truncf %34 : vector<8x64xf32> to vector<8x64xbf16>
    %c0_21 = arith.constant 0 : index
    %c0_22 = arith.constant 0 : index
    %36 = vector.load %arg7[%c0_21, %c0_22] : memref<64x128xbf16, #tpu.memory_space<vmem>>, vector<64x128xbf16>
    %cst_23 = arith.constant dense<0.000000e+00> : vector<8x128xf32>
    %37 = tpu.matmul %35, %36, %cst_23 {dimension_numbers = #tpu.dot_dimension_numbers<[1], [0], [0], [1], [0, 0, 1, 1], [], []>} : vector<8x64xbf16>, vector<64x128xbf16>, vector<8x128xf32> -> vector<8x128xf32>
    %c0_24 = arith.constant 0 : index
    %c0_25 = arith.constant 0 : index
    %38 = vector.load %arg8[%c0_24, %c0_25] : memref<1x128xf32, #tpu.memory_space<vmem>>, vector<1x128xf32>
    %39 = vector.broadcast %38 : vector<1x128xf32> to vector<8x128xf32>
    %40 = arith.addf %37, %39 : vector<8x128xf32>
    %41 = arith.negf %40 : vector<8x128xf32>
    %42 = math.exp %41 : vector<8x128xf32>
    %cst_26 = arith.constant 1.000000e+00 : f32
    %43 = vector.broadcast %cst_26 : f32 to vector<8x128xf32>
    %44 = arith.addf %43, %42 : vector<8x128xf32>
    %45 = arith.divf %43, %44 : vector<8x128xf32>
    %c0_27 = arith.constant 0 : index
    %c0_28 = arith.constant 0 : index
    %46 = vector.load %arg9[%c0_27, %c0_28] : memref<8x128xf32, #tpu.memory_space<vmem>>, vector<8x128xf32>
    tpu.vector_store %arg9[%c0_27, %c0_28], %45 {strides = array<i32>} : memref<8x128xf32, #tpu.memory_space<vmem>>, vector<8x128xf32>,
    return
  }
  func.func @transform_0(%arg0: i32) -> (i32, i32) {
    %c0_i32 = arith.constant 0 : i32
    %c0_i32_0 = arith.constant 0 : i32
    return %arg0, %c0_i32 : i32, i32
  }
  func.func @transform_1(%arg0: i32) -> (i32, i32) {
    %c0_i32 = arith.constant 0 : i32
    %c0_i32_0 = arith.constant 0 : i32
    %c0_i32_1 = arith.constant 0 : i32
    return %c0_i32, %c0_i32_0 : i32, i32
  }
  func.func @transform_2(%arg0: i32) -> (i32, i32) {
    %c0_i32 = arith.constant 0 : i32
    %c0_i32_0 = arith.constant 0 : i32
    %c0_i32_1 = arith.constant 0 : i32
    return %c0_i32, %c0_i32_0 : i32, i32
  }
  func.func @transform_3(%arg0: i32) -> (i32, i32) {
    %c0_i32 = arith.constant 0 : i32
    %c0_i32_0 = arith.constant 0 : i32
    %c0_i32_1 = arith.constant 0 : i32
    return %c0_i32, %c0_i32_0 : i32, i32
  }
  func.func @transform_4(%arg0: i32) -> (i32, i32) {
    %c0_i32 = arith.constant 0 : i32
    %c0_i32_0 = arith.constant 0 : i32
    %c0_i32_1 = arith.constant 0 : i32
    return %c0_i32, %c0_i32_0 : i32, i32
  }
  func.func @transform_5(%arg0: i32) -> (i32, i32) {
    %c0_i32 = arith.constant 0 : i32
    %c0_i32_0 = arith.constant 0 : i32
    %c0_i32_1 = arith.constant 0 : i32
    return %c0_i32, %c0_i32_0 : i32, i32
  }
  func.func @transform_6(%arg0: i32) -> (i32, i32) {
    %c0_i32 = arith.constant 0 : i32
    %c0_i32_0 = arith.constant 0 : i32
    %c0_i32_1 = arith.constant 0 : i32
    return %c0_i32, %c0_i32_0 : i32, i32
  }
  func.func @transform_7(%arg0: i32) -> (i32, i32) {
    %c0_i32 = arith.constant 0 : i32
    %c0_i32_0 = arith.constant 0 : i32
    %c0_i32_1 = arith.constant 0 : i32
    return %c0_i32, %c0_i32_0 : i32, i32
  }
  func.func @transform_8(%arg0: i32) -> (i32, i32) {
    %c0_i32 = arith.constant 0 : i32
    %c0_i32_0 = arith.constant 0 : i32
    return %arg0, %c0_i32 : i32, i32
  }
}

</mosaic_0001>

<llo_original>
// kernel: tpu_custom_call.1
$region0: #{tpu_custom_call.1}
  #allocation0 [shape = 'u32[]', space=smem, size = 0x4, offset = 0x4, fixed_abs, tag = 'smem constant byte address 0x4 - core index']
  #allocation1 [shape = 'u32[72,128]{1,0:T(1,128)}', space=vmem, size = 0x9000, scoped, tag = 'internal scratch']
  %s0 = inlined_call_operand.hbm [shape: f32[8,32], index: 0, kind: input, shape index: {}]
  %s1 = inlined_call_operand.hbm [shape: bf16[32,64], index: 1, kind: input, shape index: {}]
  %s2 = inlined_call_operand.hbm [shape: bf16[64,64], index: 2, kind: input, shape index: {}]
  %s3 = inlined_call_operand.hbm [shape: bf16[64,64], index: 3, kind: input, shape index: {}]
  %s4 = inlined_call_operand.hbm [shape: bf16[64,64], index: 4, kind: input, shape index: {}]
  %s5 = inlined_call_operand.vmem [shape: f32[4,64], index: 5, kind: input, shape index: {}]
  %s6 = inlined_call_operand.hbm [shape: bf16[64,128], index: 6, kind: input, shape index: {}]
  %s7 = inlined_call_operand.vmem [shape: f32[1,128], index: 7, kind: input, shape index: {}]
  %s8 = inlined_call_operand.hbm [shape: f32[8,128], index: 8, kind: output, shape index: {}]
  %s9 = sld [smem:[#allocation0]]
  $region66: #{tpu_custom_call.1} parent=0
    _
  %s11 = ssub.s32 1, %s9
  %s12 = scalar_select 0, %s11, %s9
  $region1: #{tpu_custom_call.1} parent=0
    #allocation2 [shape = 'u8[4096]{0}', space=vmem, size = 0x1000, scoped, tag = 'input window, operand 0, single buffered']
    #allocation3 [shape = 's32[1]{0}', space=sflag, size = 0x4, scoped, tag = 'scoped memory for tpu_custom_call.1']
    #allocation4 [shape = 's32[1]{0}', space=sflag, size = 0x4, scoped, tag = 'scoped memory for tpu_custom_call.1']
    #allocation5 [shape = 'u8[8192]{0}', space=vmem, size = 0x2000, scoped, tag = 'input window, operand 1, single buffered']
    #allocation6 [shape = 's32[1]{0}', space=sflag, size = 0x4, scoped, tag = 'scoped memory for tpu_custom_call.1']
    #allocation7 [shape = 'u8[16384]{0}', space=vmem, size = 0x4000, scoped, tag = 'input window, operand 2, single buffered']
    #allocation8 [shape = 'u8[16384]{0}', space=vmem, size = 0x4000, scoped, tag = 'input window, operand 3, single buffered']
    #allocation9 [shape = 's32[1]{0}', space=sflag, size = 0x4, scoped, tag = 'scoped memory for tpu_custom_call.1']
    #allocation10 [shape = 'u8[16384]{0}', space=vmem, size = 0x4000, scoped, tag = 'input window, operand 4, single buffered']
    #allocation11 [shape = 'u8[16384]{0}', space=vmem, size = 0x4000, scoped, tag = 'input window, operand 6, single buffered']
    #allocation12 [shape = 's32[1]{0}', space=sflag, size = 0x4, scoped, tag = 'scoped memory for tpu_custom_call.1']
    #allocation13 [shape = 'u8[4096]{0}', space=vmem, size = 0x1000, scoped, tag = 'output window, operand 0, single buffered']
    %13 = vsyncpa [#allocation3], 0
    %14 = vsyncpa [#allocation6], 0
    %15 = vsyncpa [#allocation9], 0
    %16 = vsyncpa [#allocation12], 0
    %17 = vsyncpa [#allocation4], 0
    // Predicated region
    $region2: #{tpu_custom_call.1} parent=1 // pred_check
      _
    $region3: #{tpu_custom_call.1} parent=1 // pred_check_branch
      %19 = sbr.rel (0) target = $region5
    $region4: #{tpu_custom_call.1} parent=1 // pred_region
      %21 = vsyncadd [#allocation3], 0
      %s23 = sshll.u32 %s0, 4
      %s24 = int_to_ptr.hbm [resolvable:$true] %s23
      %s25 = sshll.u32 [#allocation2], 4
      %s26 = int_to_ptr.vmem [resolvable:$true] %s25
      %28 = dma.hbm_to_vmem [thread:$0]  %s24, 128, %s26, [#allocation3]
    $region5: #{tpu_custom_call.1} parent=1 // pred_fallthru
      _
    // Predicated region
    $region6: #{tpu_custom_call.1} parent=1 // pred_check
      _
    $region7: #{tpu_custom_call.1} parent=1 // pred_check_branch
      %30 = sbr.rel (0) target = $region9
    $region8: #{tpu_custom_call.1} parent=1 // pred_region
      %32 = vsyncadd [#allocation6], 0
      %s33 = sshll.u32 %s1, 4
      %s34 = int_to_ptr.hbm [resolvable:$true] %s33
      %s35 = sshll.u32 [#allocation5], 4
      %s36 = int_to_ptr.vmem [resolvable:$true] %s35
      %41 = dma.hbm_to_vmem [thread:$0]  %s34, 256, %s36, [#allocation6], 64, 64, 4
    $region9: #{tpu_custom_call.1} parent=1 // pred_fallthru
      _
    // Predicated region
    $region10: #{tpu_custom_call.1} parent=1 // pred_check
      _
    $region11: #{tpu_custom_call.1} parent=1 // pred_check_branch
      %43 = sbr.rel (0) target = $region13
    $region12: #{tpu_custom_call.1} parent=1 // pred_region
      %45 = vsyncadd [#allocation6], 0
      %s46 = sshll.u32 %s2, 4
      %s47 = int_to_ptr.hbm [resolvable:$true] %s46
      %s48 = sshll.u32 [#allocation7], 4
      %s49 = int_to_ptr.vmem [resolvable:$true] %s48
      %54 = dma.hbm_to_vmem [thread:$0]  %s47, 512, %s49, [#allocation6], 64, 64, 4
    $region13: #{tpu_custom_call.1} parent=1 // pred_fallthru
      _
    // Predicated region
    $region14: #{tpu_custom_call.1} parent=1 // pred_check
      _
    $region15: #{tpu_custom_call.1} parent=1 // pred_check_branch
      %56 = sbr.rel (0) target = $region17
    $region16: #{tpu_custom_call.1} parent=1 // pred_region
      %58 = vsyncadd [#allocation9], 0
      %s59 = sshll.u32 %s3, 4
      %s60 = int_to_ptr.hbm [resolvable:$true] %s59
      %s61 = sshll.u32 [#allocation8], 4
      %s62 = int_to_ptr.vmem [resolvable:$true] %s61
      %67 = dma.hbm_to_vmem [thread:$0]  %s60, 512, %s62, [#allocation9], 64, 64, 4
    $region17: #{tpu_custom_call.1} parent=1 // pred_fallthru
      _
    // Predicated region
    $region18: #{tpu_custom_call.1} parent=1 // pred_check
      _
    $region19: #{tpu_custom_call.1} parent=1 // pred_check_branch
      %69 = sbr.rel (0) target = $region21
    $region20: #{tpu_custom_call.1} parent=1 // pred_region
      %71 = vsyncadd [#allocation9], 0
      %s72 = sshll.u32 %s4, 4
      %s73 = int_to_ptr.hbm [resolvable:$true] %s72
      %s74 = sshll.u32 [#allocation10], 4
      %s75 = int_to_ptr.vmem [resolvable:$true] %s74
      %80 = dma.hbm_to_vmem [thread:$0]  %s73, 512, %s75, [#allocation9], 64, 64, 4
    $region21: #{tpu_custom_call.1} parent=1 // pred_fallthru
      _
    // Predicated region
    $region22: #{tpu_custom_call.1} parent=1 // pred_check
      _
    $region23: #{tpu_custom_call.1} parent=1 // pred_check_branch
      %82 = sbr.rel (0) target = $region25
    $region24: #{tpu_custom_call.1} parent=1 // pred_region
      _
    $region25: #{tpu_custom_call.1} parent=1 // pred_fallthru
      _
    // Predicated region
    $region26: #{tpu_custom_call.1} parent=1 // pred_check
      _
    $region27: #{tpu_custom_call.1} parent=1 // pred_check_branch
      %84 = sbr.rel (0) target = $region29
    $region28: #{tpu_custom_call.1} parent=1 // pred_region
      %86 = vsyncadd [#allocation12], 0
      %s87 = sshll.u32 %s6, 4
      %s88 = int_to_ptr.hbm [resolvable:$true] %s87
      %s89 = sshll.u32 [#allocation11], 4
      %s90 = int_to_ptr.vmem [resolvable:$true] %s89
      %95 = dma.hbm_to_vmem [thread:$0]  %s88, 512, %s90, [#allocation12], 64, 64, 4
    $region29: #{tpu_custom_call.1} parent=1 // pred_fallthru
      _
    // Predicated region
    $region30: #{tpu_custom_call.1} parent=1 // pred_check
      _
    $region31: #{tpu_custom_call.1} parent=1 // pred_check_branch
      %97 = sbr.rel (0) target = $region33
    $region32: #{tpu_custom_call.1} parent=1 // pred_region
      _
    $region33: #{tpu_custom_call.1} parent=1 // pred_fallthru
      _
    // Predicated region
    $region34: #{tpu_custom_call.1} parent=1 // pred_check
      _
    $region35: #{tpu_custom_call.1} parent=1 // pred_check_branch
      %99 = sbr.rel (0) target = $region37
    $region36: #{tpu_custom_call.1} parent=1 // pred_region
      %101 = dma.done [#allocation3], 128
    $region37: #{tpu_custom_call.1} parent=1 // pred_fallthru
      _
    // Predicated region
    $region38: #{tpu_custom_call.1} parent=1 // pred_check
      _
    $region39: #{tpu_custom_call.1} parent=1 // pred_check_branch
      %103 = sbr.rel (0) target = $region41
    $region40: #{tpu_custom_call.1} parent=1 // pred_region
      %105 = dma.done [#allocation6], 256
    $region41: #{tpu_custom_call.1} parent=1 // pred_fallthru
      _
    // Predicated region
    $region42: #{tpu_custom_call.1} parent=1 // pred_check
      _
    $region43: #{tpu_custom_call.1} parent=1 // pred_check_branch
      %107 = sbr.rel (0) target = $region45
    $region44: #{tpu_custom_call.1} parent=1 // pred_region
      %109 = dma.done [#allocation6], 512
    $region45: #{tpu_custom_call.1} parent=1 // pred_fallthru
      _
    // Predicated region
    $region46: #{tpu_custom_call.1} parent=1 // pred_check
      _
    $region47: #{tpu_custom_call.1} parent=1 // pred_check_branch
      %111 = sbr.rel (0) target = $region49
    $region48: #{tpu_custom_call.1} parent=1 // pred_region
      %113 = dma.done [#allocation9], 512
    $region49: #{tpu_custom_call.1} parent=1 // pred_fallthru
      _
    // Predicated region
    $region50: #{tpu_custom_call.1} parent=1 // pred_check
      _
    $region51: #{tpu_custom_call.1} parent=1 // pred_check_branch
      %115 = sbr.rel (0) target = $region53
    $region52: #{tpu_custom_call.1} parent=1 // pred_region
      %117 = dma.done [#allocation9], 512
    $region53: #{tpu_custom_call.1} parent=1 // pred_fallthru
      _
    // Predicated region
    $region54: #{tpu_custom_call.1} parent=1 // pred_check
      _
    $region55: #{tpu_custom_call.1} parent=1 // pred_check_branch
      %119 = sbr.rel (0) target = $region57
    $region56: #{tpu_custom_call.1} parent=1 // pred_region
      %121 = dma.done [#allocation12], 512
    $region57: #{tpu_custom_call.1} parent=1 // pred_fallthru
      _
    %v123 = vld [vmem:[#allocation2] sm:$0xff]
    %v124 = vld [vmem:[%s5] sm:$0x1]
    %v125 = vld [vmem:[%s5 + $0x1] sm:$0x1]
    %v126 = vpack.c.bf16 %v123, %v123
    %v127 = vld [vmem:[#allocation5] sm:$0xf]
    %v128 = vld [vmem:[#allocation5 + $0x4] sm:$0xf]
    %v129 = vld [vmem:[#allocation5 + $0x8] sm:$0xf]
    %v130 = vld [vmem:[#allocation5 + $0xc] sm:$0xf]
    %v131 = vperm.slane %v124, 0
    %v136 = vunpack.c.l.b16 %v127
    %v137 = vunpack.c.l.b16 %v128
    %v138 = vunpack.c.l.b16 %v129
    %v139 = vunpack.c.l.b16 %v130
    %v140 = vpack.c.b16 %v137, %v136
    %v141 = vpack.c.b16 %v139, %v138
    %vm144 = vcmask 261120
    %v146 = vsel %vm144, %v126, 0
    %148 = vmatpush.bf16.msra.mxu0 0
    %149 = vmatpush.bf16.msra.mxu0 0
    %150 = vmatpush.bf16.msra.mxu0 0
    %151 = vmatpush.bf16.msra.mxu0 0
    %152 = vmatpush.bf16.msra.mxu0 0
    %153 = vmatpush.bf16.msra.mxu0 0
    %154 = vmatpush.bf16.msra.mxu0 %v141
    %155 = vmatpush.bf16.msra.mxu0 %v140
    %156 = vmatmul.bf16.gmra.mxu0 %v146
    %v157 = vpop.f32.mrf.mxu0
    %v158 = vadd.f32 %v131, %v157
    %v159 = vpop.f32.mrf.mxu0
    %160 = vdwg.mxu0
    %v161 = vmax.f32 %v158, 0.0
    %v162 = vpack.c.bf16 %v161, %v161
    %v163 = vld [vmem:[#allocation7] sm:$0xf]
    %v164 = vld [vmem:[#allocation7 + $0x4] sm:$0xf]
    %v165 = vld [vmem:[#allocation7 + $0x8] sm:$0xf]
    %v166 = vld [vmem:[#allocation7 + $0xc] sm:$0xf]
    %v167 = vld [vmem:[#allocation7 + $0x10] sm:$0xf]
    %v168 = vld [vmem:[#allocation7 + $0x14] sm:$0xf]
    %v169 = vld [vmem:[#allocation7 + $0x18] sm:$0xf]
    %v170 = vld [vmem:[#allocation7 + $0x1c] sm:$0xf]
    %v171 = vperm.slane %v125, 0
    %v180 = vunpack.c.l.b16 %v163
    %v181 = vunpack.c.l.b16 %v164
    %v182 = vunpack.c.l.b16 %v165
    %v183 = vunpack.c.l.b16 %v166
    %v184 = vunpack.c.l.b16 %v167
    %v185 = vunpack.c.l.b16 %v168
    %v186 = vunpack.c.l.b16 %v169
    %v187 = vunpack.c.l.b16 %v170
    %v188 = vpack.c.b16 %v181, %v180
    %v189 = vpack.c.b16 %v183, %v182
    %v190 = vpack.c.b16 %v185, %v184
    %v191 = vpack.c.b16 %v187, %v186
    %vm196 = vcmask 523264
    %v198 = vsel %vm196, %v162, 0
    %200 = vmatpush.bf16.msra.mxu0 0
    %201 = vmatpush.bf16.msra.mxu0 0
    %202 = vmatpush.bf16.msra.mxu0 0
    %203 = vmatpush.bf16.msra.mxu0 0
    %204 = vmatpush.bf16.msra.mxu0 %v191
    %205 = vmatpush.bf16.msra.mxu0 %v190
    %206 = vmatpush.bf16.msra.mxu0 %v189
    %207 = vmatpush.bf16.msra.mxu0 %v188
    %208 = vmatmul.bf16.gmra.mxu0 %v198
    %v209 = vpop.f32.mrf.mxu0
    %v210 = vadd.f32 %v171, %v209
    %v211 = vpop.f32.mrf.mxu0
    %212 = vdwg.mxu0
    %v213 = vmax.f32 %v210, 0.0
    %v214 = vadd.f32 %v213, %v161
    %v215 = vld [vmem:[%s5 + $0x2] sm:$0x1]
    %v216 = vld [vmem:[%s5 + $0x3] sm:$0x1]
    %v217 = vpack.c.bf16 %v214, %v214
    %v218 = vld [vmem:[#allocation8] sm:$0xf]
    %v219 = vld [vmem:[#allocation8 + $0x4] sm:$0xf]
    %v220 = vld [vmem:[#allocation8 + $0x8] sm:$0xf]
    %v221 = vld [vmem:[#allocation8 + $0xc] sm:$0xf]
    %v222 = vld [vmem:[#allocation8 + $0x10] sm:$0xf]
    %v223 = vld [vmem:[#allocation8 + $0x14] sm:$0xf]
    %v224 = vld [vmem:[#allocation8 + $0x18] sm:$0xf]
    %v225 = vld [vmem:[#allocation8 + $0x1c] sm:$0xf]
    %v226 = vperm.slane %v215, 0
    %v235 = vunpack.c.l.b16 %v218
    %v236 = vunpack.c.l.b16 %v219
    %v237 = vunpack.c.l.b16 %v220
    %v238 = vunpack.c.l.b16 %v221
    %v239 = vunpack.c.l.b16 %v222
    %v240 = vunpack.c.l.b16 %v223
    %v241 = vunpack.c.l.b16 %v224
    %v242 = vunpack.c.l.b16 %v225
    %v243 = vpack.c.b16 %v236, %v235
    %v244 = vpack.c.b16 %v238, %v237
    %v245 = vpack.c.b16 %v240, %v239
    %v246 = vpack.c.b16 %v242, %v241
    %v252 = vsel %vm196, %v217, 0
    %254 = vmatpush.bf16.msra.mxu0 0
    %255 = vmatpush.bf16.msra.mxu0 0
    %256 = vmatpush.bf16.msra.mxu0 0
    %257 = vmatpush.bf16.msra.mxu0 0
    %258 = vmatpush.bf16.msra.mxu0 %v246
    %259 = vmatpush.bf16.msra.mxu0 %v245
    %260 = vmatpush.bf16.msra.mxu0 %v244
    %261 = vmatpush.bf16.msra.mxu0 %v243
    %262 = vmatmul.bf16.gmra.mxu0 %v252
    %v263 = vpop.f32.mrf.mxu0
    %v264 = vadd.f32 %v226, %v263
    %v265 = vpop.f32.mrf.mxu0
    %266 = vdwg.mxu0
    %v267 = vmax.f32 %v264, 0.0
    %v268 = vpack.c.bf16 %v267, %v267
    %v269 = vld [vmem:[#allocation10] sm:$0xf]
    %v270 = vld [vmem:[#allocation10 + $0x4] sm:$0xf]
    %v271 = vld [vmem:[#allocation10 + $0x8] sm:$0xf]
    %v272 = vld [vmem:[#allocation10 + $0xc] sm:$0xf]
    %v273 = vld [vmem:[#allocation10 + $0x10] sm:$0xf]
    %v274 = vld [vmem:[#allocation10 + $0x14] sm:$0xf]
    %v275 = vld [vmem:[#allocation10 + $0x18] sm:$0xf]
    %v276 = vld [vmem:[#allocation10 + $0x1c] sm:$0xf]
    %v277 = vperm.slane %v216, 0
    %v286 = vunpack.c.l.b16 %v269
    %v287 = vunpack.c.l.b16 %v270
    %v288 = vunpack.c.l.b16 %v271
    %v289 = vunpack.c.l.b16 %v272
    %v290 = vunpack.c.l.b16 %v273
    %v291 = vunpack.c.l.b16 %v274
    %v292 = vunpack.c.l.b16 %v275
    %v293 = vunpack.c.l.b16 %v276
    %v294 = vpack.c.b16 %v287, %v286
    %v295 = vpack.c.b16 %v289, %v288
    %v296 = vpack.c.b16 %v291, %v290
    %v297 = vpack.c.b16 %v293, %v292
    %v303 = vsel %vm196, %v268, 0
    %305 = vmatpush.bf16.msra.mxu0 0
    %306 = vmatpush.bf16.msra.mxu0 0
    %307 = vmatpush.bf16.msra.mxu0 0
    %308 = vmatpush.bf16.msra.mxu0 0
    %309 = vmatpush.bf16.msra.mxu0 %v297
    %310 = vmatpush.bf16.msra.mxu0 %v296
    %311 = vmatpush.bf16.msra.mxu0 %v295
    %312 = vmatpush.bf16.msra.mxu0 %v294
    %313 = vmatmul.bf16.gmra.mxu0 %v303
    %v314 = vpop.f32.mrf.mxu0
    %v315 = vadd.f32 %v277, %v314
    %v316 = vpop.f32.mrf.mxu0
    %317 = vdwg.mxu0
    %v318 = vmax.f32 %v315, 0.0
    %v319 = vadd.f32 %v318, %v267
    %v320 = vpack.c.bf16 %v319, %v319
    %v321 = vld [vmem:[#allocation11] sm:$0xf]
    %v322 = vld [vmem:[#allocation11 + $0x4] sm:$0xf]
    %v323 = vld [vmem:[#allocation11 + $0x8] sm:$0xf]
    %v324 = vld [vmem:[#allocation11 + $0xc] sm:$0xf]
    %v325 = vld [vmem:[#allocation11 + $0x10] sm:$0xf]
    %v326 = vld [vmem:[#allocation11 + $0x14] sm:$0xf]
    %v327 = vld [vmem:[#allocation11 + $0x18] sm:$0xf]
    %v328 = vld [vmem:[#allocation11 + $0x1c] sm:$0xf]
    %v329 = vld [vmem:[%s7] sm:$0x1]
    %v331 = vperm.slane %v329, 0
    %v341 = vunpack.c.l.b16 %v321
    %v342 = vunpack.c.l.b16 %v322
    %v343 = vunpack.c.l.b16 %v323
    %v344 = vunpack.c.l.b16 %v324
    %v345 = vunpack.c.l.b16 %v325
    %v346 = vunpack.c.l.b16 %v326
    %v347 = vunpack.c.l.b16 %v327
    %v348 = vunpack.c.l.b16 %v328
    %v349 = vpack.c.b16 %v342, %v341
    %v350 = vpack.c.b16 %v344, %v343
    %v351 = vpack.c.b16 %v346, %v345
    %v352 = vpack.c.b16 %v348, %v347
    %v358 = vsel %vm196, %v320, 0
    %360 = vmatpush.bf16.msra.mxu0 0
    %361 = vmatpush.bf16.msra.mxu0 0
    %362 = vmatpush.bf16.msra.mxu0 0
    %363 = vmatpush.bf16.msra.mxu0 0
    %364 = vmatpush.bf16.msra.mxu0 %v352
    %365 = vmatpush.bf16.msra.mxu0 %v351
    %366 = vmatpush.bf16.msra.mxu0 %v350
    %367 = vmatpush.bf16.msra.mxu0 %v349
    %368 = vmatmul.bf16.gmra.mxu0 %v358
    %v369 = vpop.f32.mrf.mxu0
    %v370 = vadd.f32 %v331, %v369
    %v371 = vpop.f32.mrf.mxu0
    %372 = vdwg.mxu0
    %v373 = vxor.u32 %v370, 2147483648
    %v374 = vmul.f32 %v373, 1.442695
    %v375 = vpow.pop %v374
    %v376 = vadd.f32 %v375, 1.0
    %v377 = vrcp.pop %v376
    %v378 = vmul.f32 %v376, %v377
    %v379 = vsub.f32 1.0, %v378
    %v380 = vmul.f32 %v377, %v379
    %v381 = vadd.f32 %v377, %v380
    %vm382 = vweird.f32 %v376
    %vm383 = vweird.f32 %v377
    %vm384 = vmor %vm382, %vm383
    %v385 = vsel %vm384, %v377, %v381
    %v386 = vand.u32 2147483647, %v376
    %vm387 = vcmp.eq.f32.partialorder %v386, 8.507059e+37
    %v388 = vand.u32 %v376, 2147483648
    %v389 = vor.u32 1.1754944e-38, %v388
    %v390 = vsel %vm387, %v389, %v385
    %v391 = vmul.f32 1.0, %v390
    %392 = vst [vmem:[#allocation13] sm:$0xff] %v391
    // Predicated region
    $region58: #{tpu_custom_call.1} parent=1 // pred_check
      _
    $region59: #{tpu_custom_call.1} parent=1 // pred_check_branch
      %394 = sbr.rel (0) target = $region61
    $region60: #{tpu_custom_call.1} parent=1 // pred_region
      %396 = vsyncadd [#allocation4], 0
      %s398 = sshll.u32 [#allocation13], 4
      %s399 = int_to_ptr.vmem [resolvable:$true] %s398
      %s400 = sshll.u32 %s8, 4
      %s401 = int_to_ptr.hbm [resolvable:$true] %s400
      %403 = dma.vmem_to_hbm [thread:$0]  %s399, 128, %s401, [#allocation4]
    $region61: #{tpu_custom_call.1} parent=1 // pred_fallthru
      _
    // Predicated region
    $region62: #{tpu_custom_call.1} parent=1 // pred_check
      _
    $region63: #{tpu_custom_call.1} parent=1 // pred_check_branch
      %405 = sbr.rel (0) target = $region65
    $region64: #{tpu_custom_call.1} parent=1 // pred_region
      %407 = dma.done [#allocation4], 128
    $region65: #{tpu_custom_call.1} parent=1 // pred_fallthru
      _
    %408 = vsyncpa [#allocation3], 1
    %409 = vsyncpa [#allocation6], 1
    %410 = vsyncpa [#allocation9], 1
    %411 = vsyncpa [#allocation12], 1
    %412 = vsyncpa [#allocation4], 1

</llo_original>
